<compile_context>
chip_gen: v7x
topology: tpu7x:2x2x1
jax: 0.10.0
libtpu: 0.0.40
codegen_flags: <defaults>
</compile_context>

<pallas_src>
import jax
import jax.numpy as jnp
from jax import lax
from jax.experimental import pallas as pl
from jax.experimental.pallas import tpu as pltpu


def embed_forward_kernel(sid_ref, cid_ref, ws_t_ref, bs_ref, wc_t_ref, bc_ref,
                         o_ref):
    tn = o_ref.shape[1]
    s_num = ws_t_ref.shape[1]
    c_num = wc_t_ref.shape[1]

    sid = sid_ref[...]                                       # [1, tn] i32
    cid = cid_ref[...]                                       # [1, tn] i32

    # Build one-hot selectors in VMEM (VPU work only; nothing DMA'd from HBM).
    onehot_s = (lax.broadcasted_iota(jnp.int32, (s_num, tn), 0) == sid
                ).astype(jnp.float32)                        # [S, tn]
    onehot_c = (lax.broadcasted_iota(jnp.int32, (c_num, tn), 0) == cid
                ).astype(jnp.float32)                        # [C, tn]

    # Row gather via tiny MXU matmuls against resident transposed weights.
    emb_s = jnp.dot(ws_t_ref[...], onehot_s,
                    preferred_element_type=jnp.float32) + bs_ref[...]  # [T, tn]
    emb_c = jnp.dot(wc_t_ref[...], onehot_c,
                    preferred_element_type=jnp.float32) + bc_ref[...]  # [T, tn]

    # Sublane reduce over T -> lane-dense [1, tn]; sigmoid on the EUP.
    dist = jnp.sum(emb_s * emb_c, axis=0, keepdims=True)
    o_ref[...] = jax.nn.sigmoid(dist)


def _round_up(x, m):
    return ((x + m - 1) // m) * m


def embed_forward(input_tensor_graph, params, student_input_num, *,
                  tile_n=512):
    """input_tensor_graph: [N, S + C + 1] float32 -> returns [N] float32."""
    ws, bs, wc, bc = params
    s_num = ws.shape[0]
    c_num = wc.shape[0]
    t_dim = ws.shape[1]
    assert student_input_num == s_num
    n = input_tensor_graph.shape[0]

    # Glue (pure JAX): one-hot columns -> integer ids. Relies on the one-hot
    # encoding concretization of the abstract encoding_* methods.
    sid = jnp.argmax(input_tensor_graph[:, :s_num], axis=1).astype(jnp.int32)
    cid = jnp.argmax(input_tensor_graph[:, s_num:s_num + c_num],
                     axis=1).astype(jnp.int32)

    # Row tile: lane-dense (multiple of 128), capped at tile_n (default 512).
    tn = _round_up(min(max(tile_n, 128), max(128, _round_up(n, 128))), 128)
    n_pad = _round_up(n, tn)
    sid_row = jnp.zeros((1, n_pad), jnp.int32).at[0, :n].set(sid)
    cid_row = jnp.zeros((1, n_pad), jnp.int32).at[0, :n].set(cid)

    # Pre-transpose weights/biases once (tiny) so the kernel works [T, tile_n].
    ws_t = ws.T                                   # [T, S]
    wc_t = wc.T                                   # [T, C]
    bs_c = bs.T                                   # [T, 1]
    bc_c = bc.T                                   # [T, 1]

    grid = (n_pad // tn,)
    out = pl.pallas_call(
        embed_forward_kernel,
        out_shape=jax.ShapeDtypeStruct((1, n_pad), jnp.float32),
        grid=grid,
        in_specs=[
            pl.BlockSpec((1, tn), lambda i: (0, i)),          # sid tile
            pl.BlockSpec((1, tn), lambda i: (0, i)),          # cid tile
            pl.BlockSpec((t_dim, s_num), lambda i: (0, 0)),   # Ws^T (resident)
            pl.BlockSpec((t_dim, 1), lambda i: (0, 0)),       # bs   (resident)
            pl.BlockSpec((t_dim, c_num), lambda i: (0, 0)),   # Wc^T (resident)
            pl.BlockSpec((t_dim, 1), lambda i: (0, 0)),       # bc   (resident)
        ],
        out_specs=pl.BlockSpec((1, tn), lambda i: (0, i)),    # lane-dense out
        compiler_params=pltpu.CompilerParams(
            dimension_semantics=("parallel",),                # 2 TCs on v7x
            vmem_limit_bytes=32 * 1024 * 1024,
        ),
    )(sid_row, cid_row, ws_t, bs_c, wc_t, bc_c)
    return out[0, :n]


def make_params(key, student_input_num, concept_input_num, target_space_n):
    k1, k2, k3, k4 = jax.random.split(key, 4)
    ws = jax.random.normal(k1, (student_input_num, target_space_n), jnp.float32) * 0.1
    bs = jax.random.normal(k2, (1, target_space_n), jnp.float32) * 0.1
    wc = jax.random.normal(k3, (concept_input_num, target_space_n), jnp.float32) * 0.1
    bc = jax.random.normal(k4, (1, target_space_n), jnp.float32) * 0.1
    return ws, bs, wc, bc


if __name__ == "__main__":
    # Small, module-consistent sizes.
    student_num = 16          # => student_input_num (one-hot)
    concept_num = 12          # => concept_input_num (one-hot)
    target_space_n = 32
    N = 8

    key = jax.random.PRNGKey(0)
    kp, ks, kc, kr = jax.random.split(key, 4)

    params = make_params(kp, student_num, concept_num, target_space_n)

    # input_tensor_graph = [one-hot student | one-hot concept | relation]
    sid = jax.random.randint(ks, (N,), 0, student_num)
    cid = jax.random.randint(kc, (N,), 0, concept_num)
    rel = jax.random.uniform(kr, (N, 1), jnp.float32)
    es = jax.nn.one_hot(sid, student_num, dtype=jnp.float32)
    ec = jax.nn.one_hot(cid, concept_num, dtype=jnp.float32)
    input_tensor_graph = jnp.concatenate([es, ec, rel], axis=1)   # [N, S+C+1]

    out = embed_forward(input_tensor_graph, params, student_num)
    out = jax.block_until_ready(out)

    # Pure-JAX reference of the same forward (dense Linear formulation).
    ws, bs, wc, bc = params
    ref = jax.nn.sigmoid(jnp.sum((es @ ws + bs) * (ec @ wc + bc), axis=-1))
    assert out.shape == (N,)
    assert jnp.allclose(out, ref, atol=1e-5), (out, ref)

    print("KERNEL_OK")
</pallas_src>

<mosaic_0001>
module attributes {stable_mosaic.version = 11 : i64} {
  func.func @embed_forward_kernel(%arg0: i32, %arg1: memref<1x128xi32, #tpu.memory_space<vmem>>, %arg2: memref<1x128xi32, #tpu.memory_space<vmem>>, %arg3: memref<32x16xf32, #tpu.memory_space<vmem>>, %arg4: memref<32x1xf32, #tpu.memory_space<vmem>>, %arg5: memref<32x12xf32, #tpu.memory_space<vmem>>, %arg6: memref<32x1xf32, #tpu.memory_space<vmem>>, %arg7: memref<1x128xf32, #tpu.memory_space<vmem>>) attributes {dimension_semantics = [#tpu.dimension_semantics<parallel>], iteration_bounds = array<i64: 1>, scalar_prefetch = 0 : i64, scratch_operands = 0 : i64, tpu.core_type = #tpu.core_type<tc>, window_params = [{transform_indices = @transform_0, window_bounds = array<i64: 1, 128>}, {transform_indices = @transform_1, window_bounds = array<i64: 1, 128>}, {pipeline_mode = #tpu.pipeline_mode<synchronous>, transform_indices = @transform_2, window_bounds = array<i64: 32, 16>}, {pipeline_mode = #tpu.pipeline_mode<synchronous>, transform_indices = @transform_3, window_bounds = array<i64: 32, 1>}, {pipeline_mode = #tpu.pipeline_mode<synchronous>, transform_indices = @transform_4, window_bounds = array<i64: 32, 12>}, {pipeline_mode = #tpu.pipeline_mode<synchronous>, transform_indices = @transform_5, window_bounds = array<i64: 32, 1>}, {transform_indices = @transform_6, window_bounds = array<i64: 1, 128>}]} {
    %c0 = arith.constant 0 : index
    %c0_0 = arith.constant 0 : index
    %0 = vector.load %arg1[%c0, %c0_0] : memref<1x128xi32, #tpu.memory_space<vmem>>, vector<1x128xi32>
    %c0_1 = arith.constant 0 : index
    %c0_2 = arith.constant 0 : index
    %1 = vector.load %arg2[%c0_1, %c0_2] : memref<1x128xi32, #tpu.memory_space<vmem>>, vector<1x128xi32>
    %2 = tpu.iota {dimensions = array<i32: 0>} : vector<16x128xi32>
    %3 = vector.broadcast %0 : vector<1x128xi32> to vector<16x128xi32>
    %4 = arith.cmpi eq, %2, %3 : vector<16x128xi32>
    %5 = arith.extui %4 : vector<16x128xi1> to vector<16x128xi32>
    %6 = arith.sitofp %5 : vector<16x128xi32> to vector<16x128xf32>
    %7 = tpu.iota {dimensions = array<i32: 0>} : vector<12x128xi32>
    %8 = vector.broadcast %1 : vector<1x128xi32> to vector<12x128xi32>
    %9 = arith.cmpi eq, %7, %8 : vector<12x128xi32>
    %10 = arith.extui %9 : vector<12x128xi1> to vector<12x128xi32>
    %11 = arith.sitofp %10 : vector<12x128xi32> to vector<12x128xf32>
    %c0_3 = arith.constant 0 : index
    %c0_4 = arith.constant 0 : index
    %12 = vector.load %arg3[%c0_3, %c0_4] : memref<32x16xf32, #tpu.memory_space<vmem>>, vector<32x16xf32>
    %cst = arith.constant dense<0.000000e+00> : vector<32x128xf32>
    %13 = tpu.matmul %12, %6, %cst {dimension_numbers = #tpu.dot_dimension_numbers<[1], [0], [0], [1], [0, 0, 1, 1], [], []>} : vector<32x16xf32>, vector<16x128xf32>, vector<32x128xf32> -> vector<32x128xf32>
    %c0_5 = arith.constant 0 : index
    %c0_6 = arith.constant 0 : index
    %14 = vector.load %arg4[%c0_5, %c0_6] : memref<32x1xf32, #tpu.memory_space<vmem>>, vector<32x1xf32>
    %15 = vector.broadcast %14 : vector<32x1xf32> to vector<32x128xf32>
    %16 = arith.addf %13, %15 : vector<32x128xf32>
    %c0_7 = arith.constant 0 : index
    %c0_8 = arith.constant 0 : index
    %17 = vector.load %arg5[%c0_7, %c0_8] : memref<32x12xf32, #tpu.memory_space<vmem>>, vector<32x12xf32>
    %cst_9 = arith.constant dense<0.000000e+00> : vector<32x128xf32>
    %18 = tpu.matmul %17, %11, %cst_9 {dimension_numbers = #tpu.dot_dimension_numbers<[1], [0], [0], [1], [0, 0, 1, 1], [], []>} : vector<32x12xf32>, vector<12x128xf32>, vector<32x128xf32> -> vector<32x128xf32>
    %c0_10 = arith.constant 0 : index
    %c0_11 = arith.constant 0 : index
    %19 = vector.load %arg6[%c0_10, %c0_11] : memref<32x1xf32, #tpu.memory_space<vmem>>, vector<32x1xf32>
    %20 = vector.broadcast %19 : vector<32x1xf32> to vector<32x128xf32>
    %21 = arith.addf %18, %20 : vector<32x128xf32>
    %22 = arith.mulf %16, %21 : vector<32x128xf32>
    %cst_12 = arith.constant dense<0.000000e+00> : vector<128xf32>
    %23 = vector.multi_reduction <add>, %22, %cst_12 [0] : vector<32x128xf32> to vector<128xf32>
    %24 = vector.shape_cast %23 : vector<128xf32> to vector<1x128xf32>
    %25 = arith.negf %24 : vector<1x128xf32>
    %26 = math.exp %25 : vector<1x128xf32>
    %cst_13 = arith.constant 1.000000e+00 : f32
    %27 = vector.broadcast %cst_13 : f32 to vector<1x128xf32>
    %28 = arith.addf %27, %26 : vector<1x128xf32>
    %29 = arith.divf %27, %28 : vector<1x128xf32>
    %c0_14 = arith.constant 0 : index
    %c0_15 = arith.constant 0 : index
    %30 = vector.load %arg7[%c0_14, %c0_15] : memref<1x128xf32, #tpu.memory_space<vmem>>, vector<1x128xf32>
    tpu.vector_store %arg7[%c0_14, %c0_15], %29 {strides = array<i32>} : memref<1x128xf32, #tpu.memory_space<vmem>>, vector<1x128xf32>,
    return
  }
  func.func @transform_0(%arg0: i32) -> (i32, i32) {
    %c0_i32 = arith.constant 0 : i32
    %c0_i32_0 = arith.constant 0 : i32
    return %c0_i32, %arg0 : i32, i32
  }
  func.func @transform_1(%arg0: i32) -> (i32, i32) {
    %c0_i32 = arith.constant 0 : i32
    %c0_i32_0 = arith.constant 0 : i32
    return %c0_i32, %arg0 : i32, i32
  }
  func.func @transform_2(%arg0: i32) -> (i32, i32) {
    %c0_i32 = arith.constant 0 : i32
    %c0_i32_0 = arith.constant 0 : i32
    %c0_i32_1 = arith.constant 0 : i32
    return %c0_i32, %c0_i32_0 : i32, i32
  }
  func.func @transform_3(%arg0: i32) -> (i32, i32) {
    %c0_i32 = arith.constant 0 : i32
    %c0_i32_0 = arith.constant 0 : i32
    %c0_i32_1 = arith.constant 0 : i32
    return %c0_i32, %c0_i32_0 : i32, i32
  }
  func.func @transform_4(%arg0: i32) -> (i32, i32) {
    %c0_i32 = arith.constant 0 : i32
    %c0_i32_0 = arith.constant 0 : i32
    %c0_i32_1 = arith.constant 0 : i32
    return %c0_i32, %c0_i32_0 : i32, i32
  }
  func.func @transform_5(%arg0: i32) -> (i32, i32) {
    %c0_i32 = arith.constant 0 : i32
    %c0_i32_0 = arith.constant 0 : i32
    %c0_i32_1 = arith.constant 0 : i32
    return %c0_i32, %c0_i32_0 : i32, i32
  }
  func.func @transform_6(%arg0: i32) -> (i32, i32) {
    %c0_i32 = arith.constant 0 : i32
    %c0_i32_0 = arith.constant 0 : i32
    return %c0_i32, %arg0 : i32, i32
  }
}

</mosaic_0001>

<llo_original>
// kernel: tpu_custom_call.1
$region0: #{tpu_custom_call.1}
  #allocation0 [shape = 'u32[]', space=smem, size = 0x4, offset = 0x4, fixed_abs, tag = 'smem constant byte address 0x4 - core index']
  #allocation1 [shape = 'u32[144,128]{1,0:T(1,128)}', space=vmem, size = 0x12000, scoped, tag = 'internal scratch']
  %s0 = inlined_call_operand.vmem [shape: s32[1,128], index: 0, kind: input, shape index: {}]
  %s1 = inlined_call_operand.vmem [shape: s32[1,128], index: 1, kind: input, shape index: {}]
  %s2 = inlined_call_operand.vmem [shape: f32[32,16], index: 2, kind: input, shape index: {}]
  %s3 = inlined_call_operand.vmem [shape: f32[32,1], index: 3, kind: input, shape index: {}]
  %s4 = inlined_call_operand.vmem [shape: f32[32,12], index: 4, kind: input, shape index: {}]
  %s5 = inlined_call_operand.vmem [shape: f32[32,1], index: 5, kind: input, shape index: {}]
  %s6 = inlined_call_operand.hbm [shape: f32[1,128], index: 6, kind: output, shape index: {}]
  %s7 = sld [smem:[#allocation0]]
  $region34: #{tpu_custom_call.1} parent=0
    _
  %s9 = ssub.s32 1, %s7
  %s10 = scalar_select 0, %s9, %s7
  $region1: #{tpu_custom_call.1} parent=0
    #allocation2 [shape = 'u8[512]{0}', space=vmem, size = 0x400, scoped, tag = 'output window, operand 0, single buffered']
    #allocation3 [shape = 's32[1]{0}', space=sflag, size = 0x4, scoped, tag = 'scoped memory for tpu_custom_call.1']
    %11 = vsyncpa [#allocation3], 0
    // Predicated region
    $region2: #{tpu_custom_call.1} parent=1 // pred_check
      _
    $region3: #{tpu_custom_call.1} parent=1 // pred_check_branch
      %13 = sbr.rel (0) target = $region5
    $region4: #{tpu_custom_call.1} parent=1 // pred_region
      _
    $region5: #{tpu_custom_call.1} parent=1 // pred_fallthru
      _
    // Predicated region
    $region6: #{tpu_custom_call.1} parent=1 // pred_check
      _
    $region7: #{tpu_custom_call.1} parent=1 // pred_check_branch
      %15 = sbr.rel (0) target = $region9
    $region8: #{tpu_custom_call.1} parent=1 // pred_region
      _
    $region9: #{tpu_custom_call.1} parent=1 // pred_fallthru
      _
    // Predicated region
    $region10: #{tpu_custom_call.1} parent=1 // pred_check
      _
    $region11: #{tpu_custom_call.1} parent=1 // pred_check_branch
      %17 = sbr.rel (0) target = $region13
    $region12: #{tpu_custom_call.1} parent=1 // pred_region
      _
    $region13: #{tpu_custom_call.1} parent=1 // pred_fallthru
      _
    // Predicated region
    $region14: #{tpu_custom_call.1} parent=1 // pred_check
      _
    $region15: #{tpu_custom_call.1} parent=1 // pred_check_branch
      %19 = sbr.rel (0) target = $region17
    $region16: #{tpu_custom_call.1} parent=1 // pred_region
      _
    $region17: #{tpu_custom_call.1} parent=1 // pred_fallthru
      _
    // Predicated region
    $region18: #{tpu_custom_call.1} parent=1 // pred_check
      _
    $region19: #{tpu_custom_call.1} parent=1 // pred_check_branch
      %21 = sbr.rel (0) target = $region21
    $region20: #{tpu_custom_call.1} parent=1 // pred_region
      _
    $region21: #{tpu_custom_call.1} parent=1 // pred_fallthru
      _
    // Predicated region
    $region22: #{tpu_custom_call.1} parent=1 // pred_check
      _
    $region23: #{tpu_custom_call.1} parent=1 // pred_check_branch
      %23 = sbr.rel (0) target = $region25
    $region24: #{tpu_custom_call.1} parent=1 // pred_region
      _
    $region25: #{tpu_custom_call.1} parent=1 // pred_fallthru
      _
    %v24 = vld [vmem:[%s0] sm:$0x1]
    %v25 = vld [vmem:[%s1] sm:$0x1]
    %v26 = vlaneseq
    %v27 = vshrl.u32 %v26, 7
    %v28 = vadd.s32 %v27, 8
    %v29 = vlaneseq
    %v30 = vshrl.u32 %v29, 7
    %v31 = vsub.s32 0, %v30
    %v32 = vrot.slane %v24, %v31
    %vm33 = vcmp.eq.s32.totalorder %v27, %v32
    %vm34 = vcmp.eq.s32.totalorder %v28, %v32
    %v35 = vsel %vm33, 1, 0
    %v36 = vsel %vm34, 1, 0
    %v37 = vcvt.s32.f32 %v35
    %v38 = vcvt.s32.f32 %v36
    %v39 = vlaneseq
    %v40 = vshrl.u32 %v39, 7
    %v41 = vsub.s32 0, %v40
    %v42 = vrot.slane %v25, %v41
    %vm43 = vcmp.eq.s32.totalorder %v27, %v42
    %vm44 = vcmp.eq.s32.totalorder %v28, %v42
    %v45 = vsel %vm43, 1, 0
    %v46 = vsel %vm44, 1, 0
    %v47 = vcvt.s32.f32 %v45
    %v48 = vcvt.s32.f32 %v46
    %v49 = vld [vmem:[%s2] sm:$0xff]
    %v50 = vld [vmem:[%s2 + $0x8] sm:$0xff]
    %v51 = vld [vmem:[%s2 + $0x10] sm:$0xff]
    %v52 = vld [vmem:[%s2 + $0x18] sm:$0xff]
    %v53 = vld [vmem:[%s3] sm:$0xff]
    %v54 = vld [vmem:[%s3 + $0x8] sm:$0xff]
    %v55 = vld [vmem:[%s3 + $0x10] sm:$0xff]
    %v56 = vld [vmem:[%s3 + $0x18] sm:$0xff]
    %58 = vset.pattern.permute.xlu0 0
    %59 = vperm.xlu0 %58, %v53
    %v60 = vpop.permute.xlu0 %59
    %63 = vset.pattern.permute.xlu0 0
    %64 = vperm.xlu0 %63, %v54
    %v65 = vpop.permute.xlu0 %64
    %68 = vset.pattern.permute.xlu0 0
    %69 = vperm.xlu0 %68, %v55
    %v70 = vpop.permute.xlu0 %69
    %73 = vset.pattern.permute.xlu0 0
    %74 = vperm.xlu0 %73, %v56
    %v75 = vpop.permute.xlu0 %74
    %vm77 = vcmask 130048
    %v79 = vsel %vm77, %v49, 0
    %v82 = vsel %vm77, %v50, 0
    %v85 = vsel %vm77, %v51, 0
    %v88 = vsel %vm77, %v52, 0
    %90 = vmatprep.subr.mxu0 0.0
    %91 = vmatpush1.msra.mxu0 %v37
    %92 = vmatprep.subr.mxu0 0.0
    %93 = vmatpush1.msra.mxu0 %v38
    %94 = vmatprep.subr.mxu0 0.0
    %95 = vmatpush1.msra.mxu0 0.0
    %96 = vmatprep.subr.mxu0 0.0
    %97 = vmatpush1.msra.mxu0 0.0
    %98 = vmatprep.subr.mxu0 0.0
    %99 = vmatpush1.msra.mxu0 0.0
    %100 = vmatprep.subr.mxu0 0.0
    %101 = vmatpush1.msra.mxu0 0.0
    %102 = vmatprep.subr.mxu0 0.0
    %103 = vmatpush1.msra.mxu0 0.0
    %104 = vmatprep.subr.mxu0 0.0
    %105 = vmatpush1.msra.mxu0 0.0
    %106 = vmatprep.subr.mxu0 0.0
    %107 = vmatpush1.msra.mxu0 0.0
    %108 = vmatprep.subr.mxu0 0.0
    %109 = vmatpush1.msra.mxu0 0.0
    %110 = vmatprep.subr.mxu0 0.0
    %111 = vmatpush1.msra.mxu0 0.0
    %112 = vmatprep.subr.mxu0 0.0
    %113 = vmatpush1.msra.mxu0 0.0
    %114 = vmatprep.subr.mxu0 0.0
    %115 = vmatpush1.msra.mxu0 0.0
    %116 = vmatprep.subr.mxu0 0.0
    %117 = vmatpush1.msra.mxu0 0.0
    %118 = vmatprep.subr.mxu0 0.0
    %119 = vmatpush1.msra.mxu0 0.0
    %120 = vmatprep.subr.mxu0 0.0
    %121 = vmatpush1.msra.mxu0 0.0
    %122 = vmatprep.subr.mxu0 0.0
    %123 = vmatpush1.msra.mxu0 0.0
    %124 = vmatprep.subr.mxu0 0.0
    %125 = vmatpush1.msra.mxu0 0.0
    %126 = vmatprep.subr.mxu0 0.0
    %127 = vmatpush1.msra.mxu0 0.0
    %128 = vmatprep.subr.mxu0 0.0
    %129 = vmatpush1.msra.mxu0 0.0
    %130 = vmatprep.subr.mxu0 0.0
    %131 = vmatpush1.msra.mxu0 0.0
    %132 = vmatprep.subr.mxu0 0.0
    %133 = vmatpush1.msra.mxu0 0.0
    %134 = vmatprep.subr.mxu0 0.0
    %135 = vmatpush1.msra.mxu0 0.0
    %136 = vmatprep.subr.mxu0 0.0
    %137 = vmatpush1.msra.mxu0 0.0
    %138 = vmatprep.subr.mxu0 0.0
    %139 = vmatpush1.msra.mxu0 0.0
    %140 = vmatprep.subr.mxu0 0.0
    %141 = vmatpush1.msra.mxu0 0.0
    %142 = vmatprep.subr.mxu0 0.0
    %143 = vmatpush1.msra.mxu0 0.0
    %144 = vmatprep.subr.mxu0 0.0
    %145 = vmatpush1.msra.mxu0 0.0
    %146 = vmatprep.subr.mxu0 0.0
    %147 = vmatpush1.msra.mxu0 0.0
    %148 = vmatprep.subr.mxu0 0.0
    %149 = vmatpush1.msra.mxu0 0.0
    %150 = vmatprep.subr.mxu0 0.0
    %151 = vmatpush1.msra.mxu0 0.0
    %152 = vmatprep.subr.mxu0 0.0
    %153 = vmatpush1.msra.mxu0 0.0
    %154 = vmatprep.mubr.f32.mxu0 0.0
    %155 = vmatmul.mubr.f32.gmra.mrb[0].mxu0 %v79
    %v156 = vpop.f32.mrb[0].mxu0
    %v157 = vadd.f32 %v60, %v156
    %v158 = vpop.f32.mrb[0].mxu0
    %159 = vmatprep.mubr.f32.mxu0 0.0
    %160 = vmatmul.mubr.f32.gmra.mrb[0].mxu0 %v82
    %v161 = vpop.f32.mrb[0].mxu0
    %v162 = vadd.f32 %v65, %v161
    %v163 = vpop.f32.mrb[0].mxu0
    %164 = vmatprep.mubr.f32.mxu0 0.0
    %165 = vmatmul.mubr.f32.gmra.mrb[0].mxu0 %v85
    %v166 = vpop.f32.mrb[0].mxu0
    %v167 = vadd.f32 %v70, %v166
    %v168 = vpop.f32.mrb[0].mxu0
    %169 = vmatprep.mubr.f32.mxu0 0.0
    %170 = vmatmul.mubr.f32.gmra.mrb[0].mxu0 %v88
    %v171 = vpop.f32.mrb[0].mxu0
    %v172 = vadd.f32 %v75, %v171
    %v173 = vpop.f32.mrb[0].mxu0
    %174 = vdwg.mxu0
    %v175 = vld [vmem:[%s4] sm:$0xff]
    %v176 = vld [vmem:[%s4 + $0x8] sm:$0xff]
    %v177 = vld [vmem:[%s4 + $0x10] sm:$0xff]
    %v178 = vld [vmem:[%s4 + $0x18] sm:$0xff]
    %v179 = vld [vmem:[%s5] sm:$0xff]
    %v180 = vld [vmem:[%s5 + $0x8] sm:$0xff]
    %v181 = vld [vmem:[%s5 + $0x10] sm:$0xff]
    %v182 = vld [vmem:[%s5 + $0x18] sm:$0xff]
    %184 = vset.pattern.permute.xlu0 0
    %185 = vperm.xlu0 %184, %v179
    %v186 = vpop.permute.xlu0 %185
    %189 = vset.pattern.permute.xlu0 0
    %190 = vperm.xlu0 %189, %v180
    %v191 = vpop.permute.xlu0 %190
    %194 = vset.pattern.permute.xlu0 0
    %195 = vperm.xlu0 %194, %v181
    %v196 = vpop.permute.xlu0 %195
    %199 = vset.pattern.permute.xlu0 0
    %200 = vperm.xlu0 %199, %v182
    %v201 = vpop.permute.xlu0 %200
    %vm203 = vcmask 97280
    %v205 = vsel %vm203, %v175, 0
    %v208 = vsel %vm203, %v176, 0
    %v211 = vsel %vm203, %v177, 0
    %v214 = vsel %vm203, %v178, 0
    %vm216 = vcmask 1043456
    %v218 = vsel %vm216, %v48, 0
    %220 = vmatprep.subr.mxu0 0.0
    %221 = vmatpush1.msra.mxu0 %v47
    %222 = vmatprep.subr.mxu0 0.0
    %223 = vmatpush1.msra.mxu0 %v218
    %224 = vmatprep.subr.mxu0 0.0
    %225 = vmatpush1.msra.mxu0 0.0
    %226 = vmatprep.subr.mxu0 0.0
    %227 = vmatpush1.msra.mxu0 0.0
    %228 = vmatprep.subr.mxu0 0.0
    %229 = vmatpush1.msra.mxu0 0.0
    %230 = vmatprep.subr.mxu0 0.0
    %231 = vmatpush1.msra.mxu0 0.0
    %232 = vmatprep.subr.mxu0 0.0
    %233 = vmatpush1.msra.mxu0 0.0
    %234 = vmatprep.subr.mxu0 0.0
    %235 = vmatpush1.msra.mxu0 0.0
    %236 = vmatprep.subr.mxu0 0.0
    %237 = vmatpush1.msra.mxu0 0.0
    %238 = vmatprep.subr.mxu0 0.0
    %239 = vmatpush1.msra.mxu0 0.0
    %240 = vmatprep.subr.mxu0 0.0
    %241 = vmatpush1.msra.mxu0 0.0
    %242 = vmatprep.subr.mxu0 0.0
    %243 = vmatpush1.msra.mxu0 0.0
    %244 = vmatprep.subr.mxu0 0.0
    %245 = vmatpush1.msra.mxu0 0.0
    %246 = vmatprep.subr.mxu0 0.0
    %247 = vmatpush1.msra.mxu0 0.0
    %248 = vmatprep.subr.mxu0 0.0
    %249 = vmatpush1.msra.mxu0 0.0
    %250 = vmatprep.subr.mxu0 0.0
    %251 = vmatpush1.msra.mxu0 0.0
    %252 = vmatprep.subr.mxu0 0.0
    %253 = vmatpush1.msra.mxu0 0.0
    %254 = vmatprep.subr.mxu0 0.0
    %255 = vmatpush1.msra.mxu0 0.0
    %256 = vmatprep.subr.mxu0 0.0
    %257 = vmatpush1.msra.mxu0 0.0
    %258 = vmatprep.subr.mxu0 0.0
    %259 = vmatpush1.msra.mxu0 0.0
    %260 = vmatprep.subr.mxu0 0.0
    %261 = vmatpush1.msra.mxu0 0.0
    %262 = vmatprep.subr.mxu0 0.0
    %263 = vmatpush1.msra.mxu0 0.0
    %264 = vmatprep.subr.mxu0 0.0
    %265 = vmatpush1.msra.mxu0 0.0
    %266 = vmatprep.subr.mxu0 0.0
    %267 = vmatpush1.msra.mxu0 0.0
    %268 = vmatprep.subr.mxu0 0.0
    %269 = vmatpush1.msra.mxu0 0.0
    %270 = vmatprep.subr.mxu0 0.0
    %271 = vmatpush1.msra.mxu0 0.0
    %272 = vmatprep.subr.mxu0 0.0
    %273 = vmatpush1.msra.mxu0 0.0
    %274 = vmatprep.subr.mxu0 0.0
    %275 = vmatpush1.msra.mxu0 0.0
    %276 = vmatprep.subr.mxu0 0.0
    %277 = vmatpush1.msra.mxu0 0.0
    %278 = vmatprep.subr.mxu0 0.0
    %279 = vmatpush1.msra.mxu0 0.0
    %280 = vmatprep.subr.mxu0 0.0
    %281 = vmatpush1.msra.mxu0 0.0
    %282 = vmatprep.subr.mxu0 0.0
    %283 = vmatpush1.msra.mxu0 0.0
    %284 = vmatprep.mubr.f32.mxu0 0.0
    %285 = vmatmul.mubr.f32.gmra.mrb[0].mxu0 %v205
    %v286 = vpop.f32.mrb[0].mxu0
    %v287 = vadd.f32 %v186, %v286
    %v288 = vpop.f32.mrb[0].mxu0
    %289 = vmatprep.mubr.f32.mxu0 0.0
    %290 = vmatmul.mubr.f32.gmra.mrb[0].mxu0 %v208
    %v291 = vpop.f32.mrb[0].mxu0
    %v292 = vadd.f32 %v191, %v291
    %v293 = vpop.f32.mrb[0].mxu0
    %294 = vmatprep.mubr.f32.mxu0 0.0
    %295 = vmatmul.mubr.f32.gmra.mrb[0].mxu0 %v211
    %v296 = vpop.f32.mrb[0].mxu0
    %v297 = vadd.f32 %v196, %v296
    %v298 = vpop.f32.mrb[0].mxu0
    %299 = vmatprep.mubr.f32.mxu0 0.0
    %300 = vmatmul.mubr.f32.gmra.mrb[0].mxu0 %v214
    %v301 = vpop.f32.mrb[0].mxu0
    %v302 = vadd.f32 %v201, %v301
    %v303 = vpop.f32.mrb[0].mxu0
    %304 = vdwg.mxu0
    %v305 = vmul.f32 %v157, %v287
    %v306 = vmul.f32 %v162, %v292
    %v307 = vmul.f32 %v167, %v297
    %v308 = vmul.f32 %v172, %v302
    %v309 = vadd.f32 %v305, %v306
    %v310 = vadd.f32 %v309, %v307
    %v311 = vadd.f32 %v310, %v308
    %v312 = vrot.slane %v311, 4
    %v313 = vadd.f32 %v311, %v312
    %v314 = vrot.slane %v313, 2
    %v315 = vadd.f32 %v313, %v314
    %v316 = vrot.slane %v315, 1
    %v317 = vadd.f32 %v315, %v316
    %v318 = vxor.u32 %v317, 2147483648
    %v319 = vmul.f32 %v318, 1.442695
    %v320 = vpow.pop %v319
    %v321 = vadd.f32 %v320, 1.0
    %v322 = vrcp.pop %v321
    %v323 = vmul.f32 1.0, %v322
    %324 = vst [vmem:[#allocation2] sm:$0x1] %v323
    // Predicated region
    $region26: #{tpu_custom_call.1} parent=1 // pred_check
      _
    $region27: #{tpu_custom_call.1} parent=1 // pred_check_branch
      %326 = sbr.rel (0) target = $region29
    $region28: #{tpu_custom_call.1} parent=1 // pred_region
      %s328 = ssub.s32 16, 16
      %329 = vsyncadd [#allocation3], %s328
      %s331 = sshll.u32 [#allocation2], 4
      %s332 = int_to_ptr.vmem [resolvable:$true] %s331
      %334 = dma.vmem_to_hbm [thread:$0]  %s332, 16, %s6, [#allocation3]
    $region29: #{tpu_custom_call.1} parent=1 // pred_fallthru
      _
    // Predicated region
    $region30: #{tpu_custom_call.1} parent=1 // pred_check
      _
    $region31: #{tpu_custom_call.1} parent=1 // pred_check_branch
      %336 = sbr.rel (0) target = $region33
    $region32: #{tpu_custom_call.1} parent=1 // pred_region
      %337 = dma.done [#allocation3], 16
    $region33: #{tpu_custom_call.1} parent=1 // pred_fallthru
      _
    %338 = vsyncpa [#allocation3], 1

</llo_original>
